<compile_context>
chip_gen: v5e
topology: v5e:2x2
jax: 0.10.0
libtpu: 0.0.40
codegen_flags: <defaults>
</compile_context>

<pallas_src>
import functools

import jax
import jax.numpy as jnp
from jax import lax
from jax.experimental import pallas as pl
from jax.experimental.pallas import tpu as pltpu


def _vmem_estimate(c_blk, T, T_out, K, itemsize):
    """Rough VMEM footprint: double-buffered blocks + padded-window scratch."""
    x_blk = T * c_blk * itemsize
    o_blk = T_out * c_blk * itemsize
    w_blk = K * c_blk * itemsize
    b_blk = c_blk * itemsize
    window = ((-0) + (T_out + K - 1) + 8) * c_blk * 4      # f32 scratch (+ slack)
    return 2 * (x_blk + o_blk + w_blk + b_blk) + window


def _choose_c_block(C, T, T_out, K, itemsize, budget_bytes=20 * 1024 * 1024):
    """Pick a lane-dense channel tile (multiple of 128 when possible) that keeps
    the double-buffered working set comfortably inside VMEM on all generations
    (v7x has only 64 MiB physical / 32 MiB default scoped VMEM)."""
    if C % 128 == 0:
        candidates = [c for c in (512, 256, 128) if C % c == 0] or [128]
    else:
        candidates = [C]                      # small / odd C: full extent on lanes
    for cb in candidates:
        if _vmem_estimate(cb, T, T_out, K, itemsize) <= budget_bytes:
            return cb
    return candidates[-1]


def _choose_chunk_rows(T_out, c_blk):
    """Rows per accumulator chunk: ~16 vregs of f32 (rows * c_blk * 4B <= 64KiB)."""
    r = max(8, (16384 // max(c_blk, 1)) // 8 * 8)
    return max(1, min(T_out, r))


def _dwconv_kernel(x_ref, w_ref, b_ref, o_ref, xp_ref, *, pad_l, chunk_rows):
    # x_ref : (1, T, Cb)    input tile  (time on sublanes, channels on lanes)
    # w_ref : (K, Cb)       depthwise taps
    # b_ref : (1, Cb)       bias (lane-dense)
    # o_ref : (1, T_out, Cb) output tile
    # xp_ref: (W, Cb) f32   zero-padded input window scratch (in-kernel F.pad)
    T = x_ref.shape[1]
    K = w_ref.shape[0]
    Cb = w_ref.shape[1]
    T_out = o_ref.shape[1]
    W = xp_ref.shape[0]

    lead = (-pad_l) % 8                 # so the bulk x copy lands sublane-aligned
    front = lead + pad_l                # multiple of 8
    pad_r_tail = W - front - T          # right zero-padding rows in the scratch

    # ---- Build the zero-padded input window in VMEM (replaces jnp.pad). ----
    if front > 0:
        xp_ref[pl.ds(0, front), :] = jnp.zeros((front, Cb), jnp.float32)
    xp_ref[pl.ds(front, T), :] = x_ref[0, :, :].astype(jnp.float32)
    if pad_r_tail > 0:
        xp_ref[pl.ds(front + T, pad_r_tail), :] = jnp.zeros(
            (pad_r_tail, Cb), jnp.float32)

    bias = b_ref[...].astype(jnp.float32)            # (1, Cb), lane-dense

    def do_chunk(base, rows):
        # Accumulator initialized with the broadcast bias (one fewer VPU pass);
        # it stays in vregs across all K taps.
        acc = jnp.broadcast_to(bias, (rows, Cb))
        for k in range(K):                           # static unroll over taps
            # Tap shift = pure sublane-address offset into the padded window.
            xk = xp_ref[pl.ds(lead + base + k, rows), :]
            wk = w_ref[pl.ds(k, 1), :].astype(jnp.float32)   # (1, Cb)
            acc = acc + xk * wk
        o_ref[0, pl.ds(base, rows), :] = acc.astype(o_ref.dtype)

    n_full = T_out // chunk_rows
    rem = T_out - n_full * chunk_rows

    if n_full > 0:
        def chunk_body(ci, carry):
            base = ci * chunk_rows
            if chunk_rows % 8 == 0:
                base = pl.multiple_of(base, 8)       # aligned lane-dense store
            do_chunk(base, chunk_rows)
            return carry
        lax.fori_loop(0, n_full, chunk_body, 0)
    if rem > 0:
        do_chunk(n_full * chunk_rows, rem)


def depthwise_conv1d(x, weight, bias, padding):
    """Pallas TPU equivalent of `F.pad(x, padding); nn.Conv1d(C, C, K, groups=C)(x)`.

    x:       (B, C, T)   NCT layout, like the PyTorch module
    weight:  (C, 1, K)   PyTorch depthwise Conv1d weight layout
    bias:    (C,)
    padding: (pad_left, pad_right) applied to the time axis
    """
    B, C, T = x.shape
    assert weight.shape[0] == C and weight.shape[1] == 1, weight.shape
    K = weight.shape[-1]
    pad_l, pad_r = int(padding[0]), int(padding[1])
    assert pad_l >= 0 and pad_r >= 0, padding
    T_out = T + pad_l + pad_r - K + 1
    assert T_out >= 1, (T, K, padding)

    # Layout plumbing outside the kernel: channels -> lanes.
    x_t = jnp.transpose(x, (0, 2, 1))              # (B, T, C)
    w2 = jnp.transpose(weight[:, 0, :], (1, 0))    # (K, C)
    b2 = bias.reshape(1, C)                        # lane-dense bias

    c_blk = _choose_c_block(C, T, T_out, K, x.dtype.itemsize)
    chunk_rows = _choose_chunk_rows(T_out, c_blk)
    n_c = C // c_blk
    lead = (-pad_l) % 8
    window = lead + pad_l + T + pad_r              # padded-input scratch length

    kernel = functools.partial(_dwconv_kernel, pad_l=pad_l, chunk_rows=chunk_rows)

    vmem_est = _vmem_estimate(c_blk, T, T_out, K, x.dtype.itemsize)
    compiler_params = pltpu.CompilerParams(
        dimension_semantics=("parallel", "parallel"),   # no reduction axis
        vmem_limit_bytes=int(max(28 * 1024 * 1024, 2 * vmem_est)),
    )

    out_t = pl.pallas_call(
        kernel,
        out_shape=jax.ShapeDtypeStruct((B, T_out, C), x.dtype),
        grid=(B, n_c),
        in_specs=[
            pl.BlockSpec((1, T, c_blk), lambda b, c: (b, 0, c)),     # x
            pl.BlockSpec((K, c_blk), lambda b, c: (0, c)),           # weights
            pl.BlockSpec((1, c_blk), lambda b, c: (0, c)),           # bias
        ],
        out_specs=pl.BlockSpec((1, T_out, c_blk), lambda b, c: (b, 0, c)),
        scratch_shapes=[pltpu.VMEM((window, c_blk), jnp.float32)],
        compiler_params=compiler_params,
    )(x_t, w2, b2)

    return jnp.transpose(out_t, (0, 2, 1))         # back to (B, C, T_out)


if __name__ == "__main__":
    # Small shapes consistent with the module: chan_in == chan_out (depthwise),
    # causal padding (K-1, 0) as used in the Conformer conv module.
    B, C, T, K = 2, 4, 16, 3
    padding = (K - 1, 0)

    key = jax.random.PRNGKey(0)
    kx, kw, kb = jax.random.split(key, 3)
    x = jax.random.normal(kx, (B, C, T), dtype=jnp.float32)
    weight = jax.random.normal(kw, (C, 1, K), dtype=jnp.float32) * 0.1
    bias = jax.random.normal(kb, (C,), dtype=jnp.float32) * 0.1

    out = depthwise_conv1d(x, weight, bias, padding)
    out = jax.block_until_ready(out)

    # Cross-check against plain-JAX depthwise conv (same semantics as PyTorch).
    x_pad = jnp.pad(x, ((0, 0), (0, 0), (padding[0], padding[1])))
    ref = lax.conv_general_dilated(
        x_pad, weight,
        window_strides=(1,), padding="VALID",
        dimension_numbers=("NCH", "OIH", "NCH"),
        feature_group_count=C,
    ) + bias[None, :, None]

    assert out.shape == (B, C, T), out.shape
    assert jnp.allclose(out, ref, atol=1e-5, rtol=1e-5), \
        float(jnp.max(jnp.abs(out - ref)))
    print("KERNEL_OK")
</pallas_src>

<mosaic_0001>
module attributes {stable_mosaic.version = 11 : i64} {
  func.func @_dwconv_kernel(%arg0: i32, %arg1: i32, %arg2: memref<1x16x4xf32, #tpu.memory_space<vmem>>, %arg3: memref<3x4xf32, #tpu.memory_space<vmem>>, %arg4: memref<1x4xf32, #tpu.memory_space<vmem>>, %arg5: memref<1x16x4xf32, #tpu.memory_space<vmem>>, %arg6: memref<24x4xf32, #tpu.memory_space<vmem>>) attributes {dimension_semantics = [#tpu.dimension_semantics<parallel>, #tpu.dimension_semantics<parallel>], iteration_bounds = array<i64: 2, 1>, scalar_prefetch = 0 : i64, scratch_operands = 1 : i64, tpu.core_type = #tpu.core_type<tc>, window_params = [{transform_indices = @transform_0, window_bounds = array<i64: 1, 16, 4>}, {transform_indices = @transform_1, window_bounds = array<i64: 3, 4>}, {transform_indices = @transform_2, window_bounds = array<i64: 1, 4>}, {transform_indices = @transform_3, window_bounds = array<i64: 1, 16, 4>}]} {
    %cst = arith.constant 0.000000e+00 : f32
    %0 = vector.broadcast %cst : f32 to vector<8x4xf32>
    %c0 = arith.constant 0 : index
    %c0_0 = arith.constant 0 : index
    %1 = vector.load %arg6[%c0, %c0_0] : memref<24x4xf32, #tpu.memory_space<vmem>>, vector<8x4xf32>
    tpu.vector_store %arg6[%c0, %c0_0], %0 {strides = array<i32>} : memref<24x4xf32, #tpu.memory_space<vmem>>, vector<8x4xf32>,
    %c0_1 = arith.constant 0 : index
    %c0_2 = arith.constant 0 : index
    %c0_3 = arith.constant 0 : index
    %2 = vector.load %arg2[%c0_1, %c0_2, %c0_3] : memref<1x16x4xf32, #tpu.memory_space<vmem>>, vector<1x16x4xf32>
    %3 = vector.shape_cast %2 : vector<1x16x4xf32> to vector<16x4xf32>
    %c8 = arith.constant 8 : index
    %c0_4 = arith.constant 0 : index
    %4 = vector.load %arg6[%c8, %c0_4] : memref<24x4xf32, #tpu.memory_space<vmem>>, vector<16x4xf32>
    tpu.vector_store %arg6[%c8, %c0_4], %3 {strides = array<i32>} : memref<24x4xf32, #tpu.memory_space<vmem>>, vector<16x4xf32>,
    %c0_5 = arith.constant 0 : index
    %c0_6 = arith.constant 0 : index
    %5 = vector.load %arg4[%c0_5, %c0_6] : memref<1x4xf32, #tpu.memory_space<vmem>>, vector<1x4xf32>
    %c0_i32 = arith.constant 0 : i32
    %c16_i32 = arith.constant 16 : i32
    %6 = arith.muli %c0_i32, %c16_i32 : i32
    %7 = tpu.assume_multiple %6, 8 : i32
    %8 = vector.shape_cast %5 : vector<1x4xf32> to vector<1x4xf32>
    %9 = vector.broadcast %8 : vector<1x4xf32> to vector<16x4xf32>
    %c6_i32 = arith.constant 6 : i32
    %10 = arith.addi %c6_i32, %7 : i32
    %c0_i32_7 = arith.constant 0 : i32
    %11 = arith.addi %10, %c0_i32_7 : i32
    %12 = arith.index_cast %11 : i32 to index
    %c0_8 = arith.constant 0 : index
    %13 = vector.load %arg6[%12, %c0_8] : memref<24x4xf32, #tpu.memory_space<vmem>>, vector<16x4xf32>
    %c0_9 = arith.constant 0 : index
    %c0_10 = arith.constant 0 : index
    %14 = vector.load %arg3[%c0_9, %c0_10] : memref<3x4xf32, #tpu.memory_space<vmem>>, vector<1x4xf32>
    %15 = vector.broadcast %14 : vector<1x4xf32> to vector<16x4xf32>
    %16 = arith.mulf %13, %15 : vector<16x4xf32>
    %17 = arith.addf %9, %16 : vector<16x4xf32>
    %c6_i32_11 = arith.constant 6 : i32
    %18 = arith.addi %c6_i32_11, %7 : i32
    %c1_i32 = arith.constant 1 : i32
    %19 = arith.addi %18, %c1_i32 : i32
    %20 = arith.index_cast %19 : i32 to index
    %c0_12 = arith.constant 0 : index
    %21 = vector.load %arg6[%20, %c0_12] : memref<24x4xf32, #tpu.memory_space<vmem>>, vector<16x4xf32>
    %c1 = arith.constant 1 : index
    %c0_13 = arith.constant 0 : index
    %22 = vector.load %arg3[%c1, %c0_13] : memref<3x4xf32, #tpu.memory_space<vmem>>, vector<1x4xf32>
    %23 = vector.broadcast %22 : vector<1x4xf32> to vector<16x4xf32>
    %24 = arith.mulf %21, %23 : vector<16x4xf32>
    %25 = arith.addf %17, %24 : vector<16x4xf32>
    %c6_i32_14 = arith.constant 6 : i32
    %26 = arith.addi %c6_i32_14, %7 : i32
    %c2_i32 = arith.constant 2 : i32
    %27 = arith.addi %26, %c2_i32 : i32
    %28 = arith.index_cast %27 : i32 to index
    %c0_15 = arith.constant 0 : index
    %29 = vector.load %arg6[%28, %c0_15] : memref<24x4xf32, #tpu.memory_space<vmem>>, vector<16x4xf32>
    %c2 = arith.constant 2 : index
    %c0_16 = arith.constant 0 : index
    %30 = vector.load %arg3[%c2, %c0_16] : memref<3x4xf32, #tpu.memory_space<vmem>>, vector<1x4xf32>
    %31 = vector.broadcast %30 : vector<1x4xf32> to vector<16x4xf32>
    %32 = arith.mulf %29, %31 : vector<16x4xf32>
    %33 = arith.addf %25, %32 : vector<16x4xf32>
    %c0_17 = arith.constant 0 : index
    %34 = arith.index_cast %7 : i32 to index
    %c0_18 = arith.constant 0 : index
    %35 = vector.load %arg5[%c0_17, %34, %c0_18] : memref<1x16x4xf32, #tpu.memory_space<vmem>>, vector<1x16x4xf32>
    %36 = vector.shape_cast %35 : vector<1x16x4xf32> to vector<16x4xf32>
    %37 = vector.shape_cast %33 : vector<16x4xf32> to vector<1x16x4xf32>
    tpu.vector_store %arg5[%c0_17, %34, %c0_18], %37 {strides = array<i32>} : memref<1x16x4xf32, #tpu.memory_space<vmem>>, vector<1x16x4xf32>,
    %c1_i32_19 = arith.constant 1 : i32
    return
  }
  func.func @transform_0(%arg0: i32, %arg1: i32) -> (i32, i32, i32) {
    %c0_i32 = arith.constant 0 : i32
    %c0_i32_0 = arith.constant 0 : i32
    return %arg0, %c0_i32, %arg1 : i32, i32, i32
  }
  func.func @transform_1(%arg0: i32, %arg1: i32) -> (i32, i32) {
    %c0_i32 = arith.constant 0 : i32
    %c0_i32_0 = arith.constant 0 : i32
    return %c0_i32, %arg1 : i32, i32
  }
  func.func @transform_2(%arg0: i32, %arg1: i32) -> (i32, i32) {
    %c0_i32 = arith.constant 0 : i32
    %c0_i32_0 = arith.constant 0 : i32
    return %c0_i32, %arg1 : i32, i32
  }
  func.func @transform_3(%arg0: i32, %arg1: i32) -> (i32, i32, i32) {
    %c0_i32 = arith.constant 0 : i32
    %c0_i32_0 = arith.constant 0 : i32
    return %arg0, %c0_i32, %arg1 : i32, i32, i32
  }
}

</mosaic_0001>

<llo_original>
// kernel: tpu_custom_call.1
$region0: #{tpu_custom_call.1}
  #allocation0 [shape = 'u32[]', space=smem, size = 0x4, offset = 0x4, fixed_abs, tag = 'smem constant byte address 0x4 - core index']
  #allocation1 [shape = 'u32[72,128]{1,0:T(1,128)}', space=vmem, size = 0x9000, scoped, tag = 'internal scratch']
  #allocation2 [shape = 'f32[24,4]{1,0:T(8,128)}', space=vmem, size = 0x3000, scoped, tag = 'scratch operand']
  %s0 = inlined_call_operand.vmem [shape: f32[2,16,4], index: 0, kind: input, shape index: {}]
  %s1 = inlined_call_operand.vmem [shape: f32[3,4], index: 1, kind: input, shape index: {}]
  %s2 = inlined_call_operand.vmem [shape: f32[1,4], index: 2, kind: input, shape index: {}]
  %s3 = inlined_call_operand.vmem [shape: f32[2,16,4], index: 3, kind: output, shape index: {}]
  %s4 = sld [smem:[#allocation0]]
  $region45: #{tpu_custom_call.1} parent=0
    _
  %s6 = ssub.s32 1, %s4
  %s7 = scalar_select 0, %s6, %s4
  loop: start=0, step=1, limit=4
  $region2: #{tpu_custom_call.1} parent=0 // loop_pre_header
    _
  $region3: #{tpu_custom_call.1} parent=0 // loop_header
    %s9 = sphi 0, %s13
    %p10 = scmp.ge.s32.totalorder %s9, 4
    %s16 = sphi 0, %s28
    %s17 = sphi 0, %s24
    %s18 = sphi 0, %s16
    %s19 = sphi 0, %s17
    %s20 = sphi 0, %s18
    %s21 = sphi 0, %s19
    %s33 = sphi 0, %s35
    %s36 = sphi 0, %s33
    %s37 = sphi 0, %s36
    %s53 = sphi 0, %s37
    %s59 = sphi 0, %s61
    %s62 = sphi 0, %s59
    %s63 = sphi 0, %s62
    %s79 = sphi 0, %s63
    %s85 = sphi 0, %s87
    %s88 = sphi 0, %s85
    %s89 = sphi 0, %s88
    %s105 = sphi 0, %s89
    %s113 = sphi 0, %s115
    %s116 = sphi 0, %s113
    %s117 = sphi 0, %s116
    %s133 = sphi 0, %s117
  $region4: #{tpu_custom_call.1} parent=0 // loop_header_branch
    %12 = sbr.rel (%p10) target = $region8
  $region5: #{tpu_custom_call.1} parent=0 // loop_body
    %s14 = ssub.s32 %s9, 1
    %s15 = ssub.s32 %s9, 2
    %s22 = sadd.s32 1, %s17
    %p23 = scmp.ge.s32.totalorder %s22, 1
    %s24 = scalar_select %p23, 0, %s22
    %s25 = sadd.s32 1, %s16
    %s26 = scalar_select %p23, %s25, %s16
    %p27 = scmp.ge.s32.totalorder %s26, 2
    %s28 = scalar_select %p27, 0, %s26
    %s29 = ssub.s32 %s16, %s28
    %s30 = ssub.s32 %s17, %s24
    %s31 = sor.u32 %s29, %s30
    %p32 = scmp.eq.s32.totalorder %s31, 0
    %s34 = sadd.s32 %s33, 1
    %s35 = scalar_select %p32, %s33, %s34
    %p38 = pneg %p32
    %p39 = scmp.eq.s32.totalorder %s9, 1
    %p40 = por %p38, %p39
    %p41 = scmp.ne.s32.totalorder %s33, %s36
    %p42 = scmp.eq.s32.totalorder %s9, 0
    %p43 = por %p41, %p42
    %p44 = scmp.ne.s32.totalorder %s33, %s36
    %p45 = scmp.eq.s32.totalorder %s14, 1
    %p46 = por %p44, %p45
    %p47 = scmp.ne.s32.totalorder %s36, %s37
    %p48 = scmp.eq.s32.totalorder %s14, 0
    %p49 = por %p47, %p48
    %p50 = scmp.ne.s32.totalorder %s36, %s37
    %p51 = scmp.eq.s32.totalorder %s15, 1
    %p52 = por %p50, %p51
    %p54 = scmp.ne.s32.totalorder %s37, %s53
    %p55 = scmp.eq.s32.totalorder %s15, 0
    %p56 = por %p54, %p55
    %s57 = ssub.s32 %s17, %s24
    %p58 = scmp.eq.s32.totalorder %s57, 0
    %s60 = sadd.s32 %s59, 1
    %s61 = scalar_select %p58, %s59, %s60
    %p64 = pneg %p58
    %p65 = scmp.eq.s32.totalorder %s9, 1
    %p66 = por %p64, %p65
    %p67 = scmp.ne.s32.totalorder %s59, %s62
    %p68 = scmp.eq.s32.totalorder %s9, 0
    %p69 = por %p67, %p68
    %p70 = scmp.ne.s32.totalorder %s59, %s62
    %p71 = scmp.eq.s32.totalorder %s14, 1
    %p72 = por %p70, %p71
    %p73 = scmp.ne.s32.totalorder %s62, %s63
    %p74 = scmp.eq.s32.totalorder %s14, 0
    %p75 = por %p73, %p74
    %p76 = scmp.ne.s32.totalorder %s62, %s63
    %p77 = scmp.eq.s32.totalorder %s15, 1
    %p78 = por %p76, %p77
    %p80 = scmp.ne.s32.totalorder %s63, %s79
    %p81 = scmp.eq.s32.totalorder %s15, 0
    %p82 = por %p80, %p81
    %s83 = ssub.s32 %s17, %s24
    %p84 = scmp.eq.s32.totalorder %s83, 0
    %s86 = sadd.s32 %s85, 1
    %s87 = scalar_select %p84, %s85, %s86
    %p90 = pneg %p84
    %p91 = scmp.eq.s32.totalorder %s9, 1
    %p92 = por %p90, %p91
    %p93 = scmp.ne.s32.totalorder %s85, %s88
    %p94 = scmp.eq.s32.totalorder %s9, 0
    %p95 = por %p93, %p94
    %p96 = scmp.ne.s32.totalorder %s85, %s88
    %p97 = scmp.eq.s32.totalorder %s14, 1
    %p98 = por %p96, %p97
    %p99 = scmp.ne.s32.totalorder %s88, %s89
    %p100 = scmp.eq.s32.totalorder %s14, 0
    %p101 = por %p99, %p100
    %p102 = scmp.ne.s32.totalorder %s88, %s89
    %p103 = scmp.eq.s32.totalorder %s15, 1
    %p104 = por %p102, %p103
    %p106 = scmp.ne.s32.totalorder %s89, %s105
    %p107 = scmp.eq.s32.totalorder %s15, 0
    %p108 = por %p106, %p107
    %s109 = ssub.s32 %s16, %s28
    %s110 = ssub.s32 %s17, %s24
    %s111 = sor.u32 %s109, %s110
    %p112 = scmp.eq.s32.totalorder %s111, 0
    %s114 = sadd.s32 %s113, 1
    %s115 = scalar_select %p112, %s113, %s114
    %p118 = pneg %p112
    %p119 = scmp.eq.s32.totalorder %s9, 1
    %p120 = por %p118, %p119
    %p121 = scmp.ne.s32.totalorder %s113, %s116
    %p122 = scmp.eq.s32.totalorder %s9, 0
    %p123 = por %p121, %p122
    %p124 = scmp.ne.s32.totalorder %s113, %s116
    %p125 = scmp.eq.s32.totalorder %s14, 1
    %p126 = por %p124, %p125
    %p127 = scmp.ne.s32.totalorder %s116, %s117
    %p128 = scmp.eq.s32.totalorder %s14, 0
    %p129 = por %p127, %p128
    %p130 = scmp.ne.s32.totalorder %s116, %s117
    %p131 = scmp.eq.s32.totalorder %s15, 1
    %p132 = por %p130, %p131
    %p134 = scmp.ne.s32.totalorder %s117, %s133
    %p135 = scmp.eq.s32.totalorder %s15, 0
    %p136 = por %p134, %p135
    %p137 = scmp.le.s32.totalorder 1, %s9
    %p138 = scmp.lt.s32.totalorder %s9, 3
    %p139 = pnand %p137, %p138
    %p140 = pneg %p139
    // Predicated region
    $region9: #{tpu_custom_call.1} parent=5 // pred_check
      _
    $region10: #{tpu_custom_call.1} parent=5 // pred_check_branch
      %142 = sbr.rel (%p139) target = $region12
    $region11: #{tpu_custom_call.1} parent=5 // pred_region
      %s143 = ssub.s32 %s9, 1
      // Predicated region
      $region13: #{tpu_custom_call.1} parent=11 // pred_check
        %p144 = pneg %p75
      $region14: #{tpu_custom_call.1} parent=11 // pred_check_branch
        %146 = sbr.rel (%p144) target = $region16
      $region15: #{tpu_custom_call.1} parent=11 // pred_region
        %p147 = scmp.lt.s32.totalorder %s19, 0
        %s148 = scalar_select %p147, %s19, 0
        %s149 = smul.addr %s148, 4
        %s150 = scalar_lea.vmem %s1, %s149
      $region16: #{tpu_custom_call.1} parent=11 // pred_fallthru
        _
      // Predicated region
      $region17: #{tpu_custom_call.1} parent=11 // pred_check
        %p151 = pneg %p101
      $region18: #{tpu_custom_call.1} parent=11 // pred_check_branch
        %153 = sbr.rel (%p151) target = $region20
      $region19: #{tpu_custom_call.1} parent=11 // pred_region
        %p154 = scmp.lt.s32.totalorder %s19, 0
        %s155 = scalar_select %p154, %s19, 0
        %s156 = scalar_lea.vmem %s2, %s155
      $region20: #{tpu_custom_call.1} parent=11 // pred_fallthru
        _
    $region12: #{tpu_custom_call.1} parent=5 // pred_fallthru
      _
    %p157 = scmp.lt.s32.totalorder %s9, 2
    // Predicated region
    $region21: #{tpu_custom_call.1} parent=5 // pred_check
      %p158 = pneg %p157
    $region22: #{tpu_custom_call.1} parent=5 // pred_check_branch
      %160 = sbr.rel (%p158) target = $region24
    $region23: #{tpu_custom_call.1} parent=5 // pred_region
      // Predicated region
      $region25: #{tpu_custom_call.1} parent=23 // pred_check
        %p161 = pneg %p43
      $region26: #{tpu_custom_call.1} parent=23 // pred_check_branch
        %163 = sbr.rel (%p161) target = $region28
      $region27: #{tpu_custom_call.1} parent=23 // pred_region
        %p164 = scmp.lt.s32.totalorder %s16, 1
        %s165 = scalar_select %p164, %s16, 1
        %p166 = scmp.lt.s32.totalorder %s17, 0
        %s167 = scalar_select %p166, %s17, 0
        %s168 = smul.addr %s165, 2
        %s169 = sadd.s32 %s167, %s168
        %s170 = smul.addr %s169, 8
        %s171 = scalar_lea.vmem %s0, %s170
      $region28: #{tpu_custom_call.1} parent=23 // pred_fallthru
        _
    $region24: #{tpu_custom_call.1} parent=5 // pred_fallthru
      _
    %p172 = scmp.le.s32.totalorder 1, %s9
    %p173 = scmp.lt.s32.totalorder %s9, 3
    %p174 = pnand %p172, %p173
    %p175 = pneg %p174
    // Predicated region
    $region29: #{tpu_custom_call.1} parent=5 // pred_check
      _
    $region30: #{tpu_custom_call.1} parent=5 // pred_check_branch
      %177 = sbr.rel (%p174) target = $region32
    $region31: #{tpu_custom_call.1} parent=5 // pred_region
      %s178 = ssub.s32 %s9, 1
      %p179 = scmp.lt.s32.totalorder %s18, 1
      %s180 = scalar_select %p179, %s18, 1
      %p181 = scmp.lt.s32.totalorder %s19, 0
      %s182 = scalar_select %p181, %s19, 0
      %s183 = smul.addr %s180, 2
      %s184 = sadd.s32 %s182, %s183
      %s185 = smul.addr %s184, 8
      %s186 = scalar_lea.vmem %s0, %s185
      %p187 = pneg %p49
      %p188 = pneg %p46
      %p189 = scmp.lt.s32.totalorder %s19, 0
      %s190 = scalar_select %p189, %s19, 0
      %s191 = smul.addr %s190, 4
      %s192 = scalar_lea.vmem %s1, %s191
      %p193 = pneg %p75
      %p194 = pneg %p72
      %p195 = scmp.lt.s32.totalorder %s19, 0
      %s196 = scalar_select %p195, %s19, 0
      %s197 = scalar_lea.vmem %s2, %s196
      %p198 = pneg %p101
      %p199 = pneg %p98
      %p200 = pneg %p129
      %p201 = pneg %p126
      %p202 = scmp.lt.s32.totalorder %s18, 1
      %s203 = scalar_select %p202, %s18, 1
      %p204 = scmp.lt.s32.totalorder %s19, 0
      %s205 = scalar_select %p204, %s19, 0
      %s206 = smul.addr %s203, 2
      %s207 = sadd.s32 %s205, %s206
      %s208 = smul.addr %s207, 8
      %s209 = scalar_lea.vmem %s3, %s208
      %p210 = scmp.lt.s32.totalorder %s18, 1
      %s211 = scalar_select %p210, %s18, 1
      %p212 = scmp.lt.s32.totalorder %s19, 0
      %s213 = scalar_select %p212, %s19, 0
      %s214 = smul.addr %s211, 2
      %s215 = sadd.s32 %s213, %s214
      %s216 = smul.addr %s215, 8
      %s217 = scalar_lea.vmem %s0, %s216
      %p218 = scmp.lt.s32.totalorder %s19, 0
      %s219 = scalar_select %p218, %s19, 0
      %s220 = smul.addr %s219, 4
      %s221 = scalar_lea.vmem %s1, %s220
      %p222 = scmp.lt.s32.totalorder %s19, 0
      %s223 = scalar_select %p222, %s19, 0
      %s224 = scalar_lea.vmem %s2, %s223
      %p225 = scmp.lt.s32.totalorder %s18, 1
      %s226 = scalar_select %p225, %s18, 1
      %p227 = scmp.lt.s32.totalorder %s19, 0
      %s228 = scalar_select %p227, %s19, 0
      %s229 = smul.addr %s226, 2
      %s230 = sadd.s32 %s228, %s229
      %s231 = smul.addr %s230, 8
      %s232 = scalar_lea.vmem %s3, %s231
      %vm233 = vcmask 31744
      %234 = vst.msk [vmem:[#allocation2] sm:$0xff] %vm233, 0.0
      %v235 = vld [vmem:[%s217] sm:$0xff]
      %v236 = vld [vmem:[%s217 + $0x8] sm:$0xff]
      %237 = vst.msk [vmem:[#allocation2 + $0x8] sm:$0xff] %vm233, %v235
      %238 = vst.msk [vmem:[#allocation2 + $0x10] sm:$0xff] %vm233, %v236
      %v239 = vld [vmem:[%s224] sm:$0x1]
      %v241 = vperm.slane %v239, 0
      %s243 = sadd.s32 0, 6
      %s244 = scalar_lea.vmem [#allocation2], %s243
      %v245 = vld [vmem:[%s244] sm:$0xff]
      %v246 = vld [vmem:[%s244 + $0x8] sm:$0xff]
      %v247 = vld [vmem:[%s221] sm:$0x1]
      %v248 = vperm.slane %v247, 0
      %v249 = vmul.f32 %v245, %v248
      %v250 = vmul.f32 %v246, %v248
      %v251 = vadd.f32 %v241, %v249
      %v252 = vadd.f32 %v241, %v250
      %s253 = sadd.s32 0, 7
      %s254 = scalar_lea.vmem [#allocation2], %s253
      %v255 = vld [vmem:[%s254] sm:$0xff]
      %v256 = vld [vmem:[%s254 + $0x8] sm:$0xff]
      %v257 = vld [vmem:[%s221 + $0x1] sm:$0x1]
      %v258 = vperm.slane %v257, 0
      %v259 = vmul.f32 %v255, %v258
      %v260 = vmul.f32 %v256, %v258
      %v261 = vadd.f32 %v251, %v259
      %v262 = vadd.f32 %v252, %v260
      %s263 = sadd.s32 0, 8
      %s264 = scalar_lea.vmem [#allocation2], %s263
      %v265 = vld [vmem:[%s264] sm:$0xff]
      %v266 = vld [vmem:[%s264 + $0x8] sm:$0xff]
      %v267 = vld [vmem:[%s221 + $0x2] sm:$0x1]
      %v268 = vperm.slane %v267, 0
      %v269 = vmul.f32 %v265, %v268
      %v270 = vmul.f32 %v266, %v268
      %v271 = vadd.f32 %v261, %v269
      %v272 = vadd.f32 %v262, %v270
      %273 = vst.msk [vmem:[%s232] sm:$0xff] %vm233, %v271
      %274 = vst.msk [vmem:[%s232 + $0x8] sm:$0xff] %vm233, %v272
      %p275 = scmp.lt.s32.totalorder %s18, 1
      %s276 = scalar_select %p275, %s18, 1
      %p277 = scmp.lt.s32.totalorder %s19, 0
      %s278 = scalar_select %p277, %s19, 0
      %s279 = smul.addr %s276, 2
      %s280 = sadd.s32 %s278, %s279
      %s281 = smul.addr %s280, 8
      %s282 = scalar_lea.vmem %s3, %s281
      // Predicated region
      $region33: #{tpu_custom_call.1} parent=31 // pred_check
        %p283 = pneg %p126
      $region34: #{tpu_custom_call.1} parent=31 // pred_check_branch
        %285 = sbr.rel (%p283) target = $region36
      $region35: #{tpu_custom_call.1} parent=31 // pred_region
        _
      $region36: #{tpu_custom_call.1} parent=31 // pred_fallthru
        _
    $region32: #{tpu_custom_call.1} parent=5 // pred_fallthru
      _
    %p286 = scmp.le.s32.totalorder 2, %s9
    // Predicated region
    $region37: #{tpu_custom_call.1} parent=5 // pred_check
      %p287 = pneg %p286
    $region38: #{tpu_custom_call.1} parent=5 // pred_check_branch
      %289 = sbr.rel (%p287) target = $region40
    $region39: #{tpu_custom_call.1} parent=5 // pred_region
      %s290 = ssub.s32 %s9, 2
      // Predicated region
      $region41: #{tpu_custom_call.1} parent=39 // pred_check
        %p291 = pneg %p132
      $region42: #{tpu_custom_call.1} parent=39 // pred_check_branch
        %293 = sbr.rel (%p291) target = $region44
      $region43: #{tpu_custom_call.1} parent=39 // pred_region
        %p294 = scmp.lt.s32.totalorder %s20, 1
        %s295 = scalar_select %p294, %s20, 1
        %p296 = scmp.lt.s32.totalorder %s21, 0
        %s297 = scalar_select %p296, %s21, 0
        %s298 = smul.addr %s295, 2
        %s299 = sadd.s32 %s297, %s298
        %s300 = smul.addr %s299, 8
        %s301 = scalar_lea.vmem %s3, %s300
      $region44: #{tpu_custom_call.1} parent=39 // pred_fallthru
        _
    $region40: #{tpu_custom_call.1} parent=5 // pred_fallthru
      _
  $region6: #{tpu_custom_call.1} parent=0 // loop_footer
    %s13 = sadd.s32 1, %s9
  $region7: #{tpu_custom_call.1} parent=0 // loop_footer_branch
    %8 = sbr.rel target = $region3
  $region8: #{tpu_custom_call.1} parent=0 // loop_exit
    _

</llo_original>
